<compile_context>
chip_gen: v6e
topology: v6e:2x2x1
jax: 0.10.0
libtpu: 0.0.40
codegen_flags: <defaults>
</compile_context>

<pallas_src>
import functools

import jax
import jax.numpy as jnp
from jax import lax
from jax.experimental import pallas as pl
from jax.experimental.pallas import tpu as pltpu


def _round_up(n, m):
    return ((n + m - 1) // m) * m


def _cdiv(a, b):
    return (a + b - 1) // b


def d_mlp_kernel(x_ref, w0_ref, b0_ref, w1_ref, b1_ref, w2_ref, b2_ref,
                 wvT_ref, o_ref, *, inner):
    insize = w0_ref.shape[1]
    block_b = x_ref.shape[1]
    n_chunks = block_b // inner

    # Tiny weights: load once per grid step, live in vregs across the chunk loop.
    w0 = w0_ref[...]                       # (32, insize)
    b0 = b0_ref[...]                       # (32, 1)
    w1 = w1_ref[...]                       # (32, 32)
    b1 = b1_ref[...]                       # (32, 1)
    w2 = w2_ref[...]                       # (16, 32)
    b2 = b2_ref[...]                       # (16, 1)
    wvT = wvT_ref[...]                     # (16, 1)
    # Hoist the per-column weight slices (JAX does not CSE broadcasts in loops).
    w0_cols = [w0[:, k:k + 1] for k in range(insize)] if insize <= 8 else None

    def chunk(c):
        j = pl.multiple_of(c * inner, inner)
        x = x_ref[:, pl.ds(j, inner)]                      # (insize, inner)

        # L0: K=insize (=2) contraction -> VPU broadcast MACs, off the MXU.
        if w0_cols is not None:
            h = b0
            for k in range(insize):
                h = h + w0_cols[k] * x[k:k + 1, :]
        else:  # large-insize fallback
            h = jnp.dot(w0, x, preferred_element_type=jnp.float32,
                        precision=lax.Precision.HIGHEST) + b0
        h = jnp.maximum(h, 0.0)                            # (32, inner)

        # L1 / L2: the only MXU work. Explicit f32 precision for torch parity.
        h = jnp.dot(w1, h, preferred_element_type=jnp.float32,
                    precision=lax.Precision.HIGHEST) + b1
        h = jnp.maximum(h, 0.0)                            # (32, inner)
        h = jnp.dot(w2, h, preferred_element_type=jnp.float32,
                    precision=lax.Precision.HIGHEST) + b2
        h = jnp.maximum(h, 0.0)                            # (16, inner)

        # V: M=1 projection -> VPU multiply + XLU cross-sublane reduction.
        o = jnp.sum(h * wvT, axis=0, keepdims=True)        # (1, inner)
        o_ref[:, pl.ds(j, inner)] = o.astype(o_ref.dtype)  # lane-dense store

    if n_chunks == 1:
        chunk(0)
    else:
        lax.fori_loop(0, n_chunks,
                      lambda c, carry: (chunk(c), carry)[1], 0,
                      unroll=n_chunks <= 8)


def d_mlp_forward(x, params, *, block_b=8192, feature_major=False):
    """Forward pass matching the PyTorch D_mlp module.

    x: (B, insize) f32 (or (insize, B) with feature_major=True, which skips
       the wrapper transpose).
    params: PyTorch-layout weights: w{i} (out, in), b{i} (out, 1), wv (1, H).
    Returns (B, 1) f32.
    """
    if feature_major:
        insize, B = x.shape
        xF = x
    else:
        B, insize = x.shape
        xF = x.T

    w0, b0, w1, b1, w2, b2, wv = (params["w0"], params["b0"], params["w1"],
                                  params["b1"], params["w2"], params["b2"],
                                  params["wv"])
    wvT = wv.T                                  # (H_last, 1) for in-kernel reduce

    # Padding / tiling policy:
    #  - pad the batch only to a multiple of 128 (lane width),
    #  - derive grid from the target tile, then the tile from the grid, so at
    #    most grid*127 padded columns are computed,
    #  - keep >= 2 grid steps when possible so v7x's two TensorCores both work.
    LANE = 128
    B128 = _round_up(max(B, 1), LANE)
    target = max(LANE, min(_round_up(block_b, LANE), B128))
    grid_n = _cdiv(B128, target)
    if grid_n == 1 and B128 >= 2 * LANE:
        grid_n = 2
    tile_b = _round_up(_cdiv(B128, grid_n), LANE)
    B_pad = grid_n * tile_b
    # Inner chunk keeps live activations <= (32, 512) f32 (16 vregs) -> no spills.
    inner = next(c for c in (512, 256, 128) if tile_b % c == 0)

    xT = jnp.pad(xF, ((0, 0), (0, B_pad - B)))  # (insize, B_pad)

    def full_spec(shape):
        return pl.BlockSpec(shape, lambda i: (0, 0))

    kernel = functools.partial(d_mlp_kernel, inner=inner)

    outT = pl.pallas_call(
        kernel,
        out_shape=jax.ShapeDtypeStruct((1, B_pad), jnp.float32),
        grid_spec=pltpu.PrefetchScalarGridSpec(
            num_scalar_prefetch=0,
            grid=(grid_n,),
            in_specs=[
                pl.BlockSpec((insize, tile_b), lambda i: (0, i)),  # x tile
                full_spec(w0.shape), full_spec(b0.shape),
                full_spec(w1.shape), full_spec(b1.shape),
                full_spec(w2.shape), full_spec(b2.shape),
                full_spec(wvT.shape),
            ],
            out_specs=pl.BlockSpec((1, tile_b), lambda i: (0, i)),
        ),
        compiler_params=pltpu.CompilerParams(
            dimension_semantics=("parallel",)),   # megacore sharding on v7x
    )(xT, w0, b0, w1, b1, w2, b2, wvT)

    # Back to the module's (B, 1) layout, dropping batch padding.
    return outT[:, :B].T


def init_params(key, insize=2, layer_sizes=(32, 32, 16)):
    """Deterministic synthetic init. PyTorch layout: W (out, in), b (out, 1)."""
    sizes = [insize] + list(layer_sizes)
    params = {}
    keys = jax.random.split(key, 2 * len(layer_sizes) + 1)
    for ix in range(len(layer_sizes)):
        fan_in, fan_out = sizes[ix], sizes[ix + 1]
        bound = 1.0 / jnp.sqrt(fan_in)
        params[f"w{ix}"] = jax.random.uniform(
            keys[2 * ix], (fan_out, fan_in), jnp.float32, -bound, bound)
        params[f"b{ix}"] = jax.random.uniform(
            keys[2 * ix + 1], (fan_out, 1), jnp.float32, -bound, bound)
    bound = 1.0 / jnp.sqrt(layer_sizes[-1])
    params["wv"] = jax.random.uniform(
        keys[-1], (1, layer_sizes[-1]), jnp.float32, -bound, bound)
    return params


def d_mlp_reference(x, params):
    """Pure-JAX reference mirroring the PyTorch forward (y = x @ W.T + b)."""
    h = jnp.maximum(x @ params["w0"].T + params["b0"].T, 0.0)
    h = jnp.maximum(h @ params["w1"].T + params["b1"].T, 0.0)
    h = jnp.maximum(h @ params["w2"].T + params["b2"].T, 0.0)
    return h @ params["wv"].T


if __name__ == "__main__":
    key = jax.random.PRNGKey(0)
    pkey, k1, k2, k3 = jax.random.split(key, 4)

    insize = 2
    params = init_params(pkey, insize=insize, layer_sizes=(32, 32, 16))

    # Small batch (original test shape): single 128-wide tile.
    x1 = jax.random.normal(k1, (16, insize), jnp.float32)
    out1 = jax.block_until_ready(d_mlp_forward(x1, params))
    ref1 = d_mlp_reference(x1, params)
    assert out1.shape == (16, 1)
    assert jnp.allclose(out1, ref1, atol=1e-5, rtol=1e-5)

    # Non-multiple-of-128 batch exercises the padded tail.
    x2 = jax.random.normal(k2, (50, insize), jnp.float32)
    out2 = jax.block_until_ready(d_mlp_forward(x2, params))
    ref2 = d_mlp_reference(x2, params)
    assert out2.shape == (50, 1)
    assert jnp.allclose(out2, ref2, atol=1e-5, rtol=1e-5)

    # Feature-major input path (skips the wrapper transpose).
    out2f = jax.block_until_ready(
        d_mlp_forward(x2.T, params, feature_major=True))
    assert jnp.allclose(out2f, ref2, atol=1e-5, rtol=1e-5)

    # Larger batch exercises the 2-step parallel grid and the inner chunk loop.
    x3 = jax.random.normal(k3, (1200, insize), jnp.float32)
    out3 = jax.block_until_ready(d_mlp_forward(x3, params))
    ref3 = d_mlp_reference(x3, params)
    assert out3.shape == (1200, 1)
    assert jnp.allclose(out3, ref3, atol=1e-5, rtol=1e-5)

    print("KERNEL_OK")
</pallas_src>

<mosaic_0001>
module attributes {stable_mosaic.version = 11 : i64} {
  func.func @d_mlp_kernel(%arg0: i32, %arg1: memref<2x128xf32, #tpu.memory_space<vmem>>, %arg2: memref<32x2xf32, #tpu.memory_space<vmem>>, %arg3: memref<32x1xf32, #tpu.memory_space<vmem>>, %arg4: memref<32x32xf32, #tpu.memory_space<vmem>>, %arg5: memref<32x1xf32, #tpu.memory_space<vmem>>, %arg6: memref<16x32xf32, #tpu.memory_space<vmem>>, %arg7: memref<16x1xf32, #tpu.memory_space<vmem>>, %arg8: memref<16x1xf32, #tpu.memory_space<vmem>>, %arg9: memref<1x128xf32, #tpu.memory_space<vmem>>) attributes {dimension_semantics = [#tpu.dimension_semantics<parallel>], iteration_bounds = array<i64: 1>, scalar_prefetch = 0 : i64, scratch_operands = 0 : i64, tpu.core_type = #tpu.core_type<tc>, window_params = [{transform_indices = @transform_0, window_bounds = array<i64: 2, 128>}, {pipeline_mode = #tpu.pipeline_mode<synchronous>, transform_indices = @transform_1, window_bounds = array<i64: 32, 2>}, {pipeline_mode = #tpu.pipeline_mode<synchronous>, transform_indices = @transform_2, window_bounds = array<i64: 32, 1>}, {pipeline_mode = #tpu.pipeline_mode<synchronous>, transform_indices = @transform_3, window_bounds = array<i64: 32, 32>}, {pipeline_mode = #tpu.pipeline_mode<synchronous>, transform_indices = @transform_4, window_bounds = array<i64: 32, 1>}, {pipeline_mode = #tpu.pipeline_mode<synchronous>, transform_indices = @transform_5, window_bounds = array<i64: 16, 32>}, {pipeline_mode = #tpu.pipeline_mode<synchronous>, transform_indices = @transform_6, window_bounds = array<i64: 16, 1>}, {pipeline_mode = #tpu.pipeline_mode<synchronous>, transform_indices = @transform_7, window_bounds = array<i64: 16, 1>}, {transform_indices = @transform_8, window_bounds = array<i64: 1, 128>}]} {
    %c0 = arith.constant 0 : index
    %c0_0 = arith.constant 0 : index
    %0 = vector.load %arg2[%c0, %c0_0] : memref<32x2xf32, #tpu.memory_space<vmem>>, vector<32x2xf32>
    %c0_1 = arith.constant 0 : index
    %c0_2 = arith.constant 0 : index
    %1 = vector.load %arg3[%c0_1, %c0_2] : memref<32x1xf32, #tpu.memory_space<vmem>>, vector<32x1xf32>
    %c0_3 = arith.constant 0 : index
    %c0_4 = arith.constant 0 : index
    %2 = vector.load %arg4[%c0_3, %c0_4] : memref<32x32xf32, #tpu.memory_space<vmem>>, vector<32x32xf32>
    %c0_5 = arith.constant 0 : index
    %c0_6 = arith.constant 0 : index
    %3 = vector.load %arg5[%c0_5, %c0_6] : memref<32x1xf32, #tpu.memory_space<vmem>>, vector<32x1xf32>
    %c0_7 = arith.constant 0 : index
    %c0_8 = arith.constant 0 : index
    %4 = vector.load %arg6[%c0_7, %c0_8] : memref<16x32xf32, #tpu.memory_space<vmem>>, vector<16x32xf32>
    %c0_9 = arith.constant 0 : index
    %c0_10 = arith.constant 0 : index
    %5 = vector.load %arg7[%c0_9, %c0_10] : memref<16x1xf32, #tpu.memory_space<vmem>>, vector<16x1xf32>
    %c0_11 = arith.constant 0 : index
    %c0_12 = arith.constant 0 : index
    %6 = vector.load %arg8[%c0_11, %c0_12] : memref<16x1xf32, #tpu.memory_space<vmem>>, vector<16x1xf32>
    %7 = vector.extract_strided_slice %0 {offsets = [0, 0], sizes = [32, 1], strides = [1, 1]} : vector<32x2xf32> to vector<32x1xf32>
    %8 = vector.extract_strided_slice %0 {offsets = [0, 1], sizes = [32, 1], strides = [1, 1]} : vector<32x2xf32> to vector<32x1xf32>
    %c0_i32 = arith.constant 0 : i32
    %9 = tpu.assume_multiple %c0_i32, 128 : i32
    %c0_13 = arith.constant 0 : index
    %10 = arith.index_cast %9 : i32 to index
    %11 = vector.load %arg1[%c0_13, %10] : memref<2x128xf32, #tpu.memory_space<vmem>>, vector<2x128xf32>
    %12 = vector.extract_strided_slice %11 {offsets = [0, 0], sizes = [1, 128], strides = [1, 1]} : vector<2x128xf32> to vector<1x128xf32>
    %13 = vector.broadcast %7 : vector<32x1xf32> to vector<32x128xf32>
    %14 = vector.broadcast %12 : vector<1x128xf32> to vector<32x128xf32>
    %15 = arith.mulf %13, %14 : vector<32x128xf32>
    %16 = vector.broadcast %1 : vector<32x1xf32> to vector<32x128xf32>
    %17 = arith.addf %16, %15 : vector<32x128xf32>
    %18 = vector.extract_strided_slice %11 {offsets = [1, 0], sizes = [1, 128], strides = [1, 1]} : vector<2x128xf32> to vector<1x128xf32>
    %19 = vector.broadcast %8 : vector<32x1xf32> to vector<32x128xf32>
    %20 = vector.broadcast %18 : vector<1x128xf32> to vector<32x128xf32>
    %21 = arith.mulf %19, %20 : vector<32x128xf32>
    %22 = arith.addf %17, %21 : vector<32x128xf32>
    %cst = arith.constant 0.000000e+00 : f32
    %23 = vector.broadcast %cst : f32 to vector<32x128xf32>
    %24 = arith.maximumf %22, %23 : vector<32x128xf32>
    %cst_14 = arith.constant dense<0.000000e+00> : vector<32x128xf32>
    %25 = tpu.matmul %2, %24, %cst_14 {dimension_numbers = #tpu.dot_dimension_numbers<[1], [0], [0], [1], [0, 0, 1, 1], [], []>, precision = #tpu.contract_precision<fp32>} : vector<32x32xf32>, vector<32x128xf32>, vector<32x128xf32> -> vector<32x128xf32>
    %26 = vector.broadcast %3 : vector<32x1xf32> to vector<32x128xf32>
    %27 = arith.addf %25, %26 : vector<32x128xf32>
    %cst_15 = arith.constant 0.000000e+00 : f32
    %28 = vector.broadcast %cst_15 : f32 to vector<32x128xf32>
    %29 = arith.maximumf %27, %28 : vector<32x128xf32>
    %cst_16 = arith.constant dense<0.000000e+00> : vector<16x128xf32>
    %30 = tpu.matmul %4, %29, %cst_16 {dimension_numbers = #tpu.dot_dimension_numbers<[1], [0], [0], [1], [0, 0, 1, 1], [], []>, precision = #tpu.contract_precision<fp32>} : vector<16x32xf32>, vector<32x128xf32>, vector<16x128xf32> -> vector<16x128xf32>
    %31 = vector.broadcast %5 : vector<16x1xf32> to vector<16x128xf32>
    %32 = arith.addf %30, %31 : vector<16x128xf32>
    %cst_17 = arith.constant 0.000000e+00 : f32
    %33 = vector.broadcast %cst_17 : f32 to vector<16x128xf32>
    %34 = arith.maximumf %32, %33 : vector<16x128xf32>
    %35 = vector.broadcast %6 : vector<16x1xf32> to vector<16x128xf32>
    %36 = arith.mulf %34, %35 : vector<16x128xf32>
    %cst_18 = arith.constant dense<0.000000e+00> : vector<128xf32>
    %37 = vector.multi_reduction <add>, %36, %cst_18 [0] : vector<16x128xf32> to vector<128xf32>
    %38 = vector.shape_cast %37 : vector<128xf32> to vector<1x128xf32>
    %c0_19 = arith.constant 0 : index
    %39 = arith.index_cast %9 : i32 to index
    %40 = vector.load %arg9[%c0_19, %39] : memref<1x128xf32, #tpu.memory_space<vmem>>, vector<1x128xf32>
    tpu.vector_store %arg9[%c0_19, %39], %38 {strides = array<i32>} : memref<1x128xf32, #tpu.memory_space<vmem>>, vector<1x128xf32>,
    return
  }
  func.func @transform_0(%arg0: i32) -> (i32, i32) {
    %c0_i32 = arith.constant 0 : i32
    %c0_i32_0 = arith.constant 0 : i32
    return %c0_i32, %arg0 : i32, i32
  }
  func.func @transform_1(%arg0: i32) -> (i32, i32) {
    %c0_i32 = arith.constant 0 : i32
    %c0_i32_0 = arith.constant 0 : i32
    %c0_i32_1 = arith.constant 0 : i32
    return %c0_i32, %c0_i32_0 : i32, i32
  }
  func.func @transform_2(%arg0: i32) -> (i32, i32) {
    %c0_i32 = arith.constant 0 : i32
    %c0_i32_0 = arith.constant 0 : i32
    %c0_i32_1 = arith.constant 0 : i32
    return %c0_i32, %c0_i32_0 : i32, i32
  }
  func.func @transform_3(%arg0: i32) -> (i32, i32) {
    %c0_i32 = arith.constant 0 : i32
    %c0_i32_0 = arith.constant 0 : i32
    %c0_i32_1 = arith.constant 0 : i32
    return %c0_i32, %c0_i32_0 : i32, i32
  }
  func.func @transform_4(%arg0: i32) -> (i32, i32) {
    %c0_i32 = arith.constant 0 : i32
    %c0_i32_0 = arith.constant 0 : i32
    %c0_i32_1 = arith.constant 0 : i32
    return %c0_i32, %c0_i32_0 : i32, i32
  }
  func.func @transform_5(%arg0: i32) -> (i32, i32) {
    %c0_i32 = arith.constant 0 : i32
    %c0_i32_0 = arith.constant 0 : i32
    %c0_i32_1 = arith.constant 0 : i32
    return %c0_i32, %c0_i32_0 : i32, i32
  }
  func.func @transform_6(%arg0: i32) -> (i32, i32) {
    %c0_i32 = arith.constant 0 : i32
    %c0_i32_0 = arith.constant 0 : i32
    %c0_i32_1 = arith.constant 0 : i32
    return %c0_i32, %c0_i32_0 : i32, i32
  }
  func.func @transform_7(%arg0: i32) -> (i32, i32) {
    %c0_i32 = arith.constant 0 : i32
    %c0_i32_0 = arith.constant 0 : i32
    %c0_i32_1 = arith.constant 0 : i32
    return %c0_i32, %c0_i32_0 : i32, i32
  }
  func.func @transform_8(%arg0: i32) -> (i32, i32) {
    %c0_i32 = arith.constant 0 : i32
    %c0_i32_0 = arith.constant 0 : i32
    return %c0_i32, %arg0 : i32, i32
  }
}

</mosaic_0001>

<llo_original>
// kernel: tpu_custom_call.1
$region0: #{tpu_custom_call.1}
  #allocation0 [shape = 'u32[]', space=smem, size = 0x4, offset = 0x4, fixed_abs, tag = 'smem constant byte address 0x4 - core index']
  #allocation1 [shape = 'u32[144,128]{1,0:T(1,128)}', space=vmem, size = 0x12000, scoped, tag = 'internal scratch']
  %s0 = inlined_call_operand.vmem [shape: f32[2,128], index: 0, kind: input, shape index: {}]
  %s1 = inlined_call_operand.vmem [shape: f32[32,2], index: 1, kind: input, shape index: {}]
  %s2 = inlined_call_operand.vmem [shape: f32[32,1], index: 2, kind: input, shape index: {}]
  %s3 = inlined_call_operand.vmem [shape: f32[32,32], index: 3, kind: input, shape index: {}]
  %s4 = inlined_call_operand.vmem [shape: f32[32,1], index: 4, kind: input, shape index: {}]
  %s5 = inlined_call_operand.vmem [shape: f32[16,32], index: 5, kind: input, shape index: {}]
  %s6 = inlined_call_operand.vmem [shape: f32[16,1], index: 6, kind: input, shape index: {}]
  %s7 = inlined_call_operand.vmem [shape: f32[16,1], index: 7, kind: input, shape index: {}]
  %s8 = inlined_call_operand.hbm [shape: f32[1,128], index: 8, kind: output, shape index: {}]
  %s9 = sld [smem:[#allocation0]]
  $region42: #{tpu_custom_call.1} parent=0
    _
  %s11 = ssub.s32 1, %s9
  %s12 = scalar_select 0, %s11, %s9
  $region1: #{tpu_custom_call.1} parent=0
    #allocation2 [shape = 'u8[512]{0}', space=vmem, size = 0x400, scoped, tag = 'output window, operand 0, single buffered']
    #allocation3 [shape = 's32[1]{0}', space=sflag, size = 0x4, scoped, tag = 'scoped memory for tpu_custom_call.1']
    %13 = vsyncpa [#allocation3], 0
    // Predicated region
    $region2: #{tpu_custom_call.1} parent=1 // pred_check
      _
    $region3: #{tpu_custom_call.1} parent=1 // pred_check_branch
      %15 = sbr.rel (0) target = $region5
    $region4: #{tpu_custom_call.1} parent=1 // pred_region
      _
    $region5: #{tpu_custom_call.1} parent=1 // pred_fallthru
      _
    // Predicated region
    $region6: #{tpu_custom_call.1} parent=1 // pred_check
      _
    $region7: #{tpu_custom_call.1} parent=1 // pred_check_branch
      %17 = sbr.rel (0) target = $region9
    $region8: #{tpu_custom_call.1} parent=1 // pred_region
      _
    $region9: #{tpu_custom_call.1} parent=1 // pred_fallthru
      _
    // Predicated region
    $region10: #{tpu_custom_call.1} parent=1 // pred_check
      _
    $region11: #{tpu_custom_call.1} parent=1 // pred_check_branch
      %19 = sbr.rel (0) target = $region13
    $region12: #{tpu_custom_call.1} parent=1 // pred_region
      _
    $region13: #{tpu_custom_call.1} parent=1 // pred_fallthru
      _
    // Predicated region
    $region14: #{tpu_custom_call.1} parent=1 // pred_check
      _
    $region15: #{tpu_custom_call.1} parent=1 // pred_check_branch
      %21 = sbr.rel (0) target = $region17
    $region16: #{tpu_custom_call.1} parent=1 // pred_region
      _
    $region17: #{tpu_custom_call.1} parent=1 // pred_fallthru
      _
    // Predicated region
    $region18: #{tpu_custom_call.1} parent=1 // pred_check
      _
    $region19: #{tpu_custom_call.1} parent=1 // pred_check_branch
      %23 = sbr.rel (0) target = $region21
    $region20: #{tpu_custom_call.1} parent=1 // pred_region
      _
    $region21: #{tpu_custom_call.1} parent=1 // pred_fallthru
      _
    // Predicated region
    $region22: #{tpu_custom_call.1} parent=1 // pred_check
      _
    $region23: #{tpu_custom_call.1} parent=1 // pred_check_branch
      %25 = sbr.rel (0) target = $region25
    $region24: #{tpu_custom_call.1} parent=1 // pred_region
      _
    $region25: #{tpu_custom_call.1} parent=1 // pred_fallthru
      _
    // Predicated region
    $region26: #{tpu_custom_call.1} parent=1 // pred_check
      _
    $region27: #{tpu_custom_call.1} parent=1 // pred_check_branch
      %27 = sbr.rel (0) target = $region29
    $region28: #{tpu_custom_call.1} parent=1 // pred_region
      _
    $region29: #{tpu_custom_call.1} parent=1 // pred_fallthru
      _
    // Predicated region
    $region30: #{tpu_custom_call.1} parent=1 // pred_check
      _
    $region31: #{tpu_custom_call.1} parent=1 // pred_check_branch
      %29 = sbr.rel (0) target = $region33
    $region32: #{tpu_custom_call.1} parent=1 // pred_region
      _
    $region33: #{tpu_custom_call.1} parent=1 // pred_fallthru
      _
    %v30 = vld [vmem:[%s1] sm:$0xff]
    %v31 = vld [vmem:[%s1 + $0x8] sm:$0xff]
    %v32 = vld [vmem:[%s1 + $0x10] sm:$0xff]
    %v33 = vld [vmem:[%s1 + $0x18] sm:$0xff]
    %v34 = vld [vmem:[%s2] sm:$0xff]
    %v35 = vld [vmem:[%s2 + $0x8] sm:$0xff]
    %v36 = vld [vmem:[%s2 + $0x10] sm:$0xff]
    %v37 = vld [vmem:[%s2 + $0x18] sm:$0xff]
    %v38 = vld [vmem:[%s3] sm:$0xff]
    %v39 = vld [vmem:[%s3 + $0x8] sm:$0xff]
    %v40 = vld [vmem:[%s3 + $0x10] sm:$0xff]
    %v41 = vld [vmem:[%s3 + $0x18] sm:$0xff]
    %v42 = vld [vmem:[%s4] sm:$0xff]
    %v43 = vld [vmem:[%s4 + $0x8] sm:$0xff]
    %v44 = vld [vmem:[%s4 + $0x10] sm:$0xff]
    %v45 = vld [vmem:[%s4 + $0x18] sm:$0xff]
    %v46 = vld [vmem:[%s5] sm:$0xff]
    %v47 = vld [vmem:[%s5 + $0x8] sm:$0xff]
    %v48 = vld [vmem:[%s6] sm:$0xff]
    %v49 = vld [vmem:[%s6 + $0x8] sm:$0xff]
    %v50 = vld [vmem:[%s7] sm:$0xff]
    %v51 = vld [vmem:[%s7 + $0x8] sm:$0xff]
    %v52 = vld [vmem:[%s0] sm:$0x3]
    %54 = vset.pattern.permute.xlu0 0
    %55 = vperm.xlu0 %54, %v30
    %v56 = vpop.permute.xlu0 %55
    %59 = vset.pattern.permute.xlu0 0
    %60 = vperm.xlu0 %59, %v31
    %v61 = vpop.permute.xlu0 %60
    %64 = vset.pattern.permute.xlu0 0
    %65 = vperm.xlu0 %64, %v32
    %v66 = vpop.permute.xlu0 %65
    %69 = vset.pattern.permute.xlu0 0
    %70 = vperm.xlu0 %69, %v33
    %v71 = vpop.permute.xlu0 %70
    %v73 = vlaneseq
    %v74 = vshrl.u32 %v73, 7
    %v75 = vsub.s32 0, %v74
    %v76 = vrot.slane %v52, %v75
    %v77 = vmul.f32 %v56, %v76
    %v78 = vmul.f32 %v61, %v76
    %v79 = vmul.f32 %v66, %v76
    %v80 = vmul.f32 %v71, %v76
    %82 = vset.pattern.permute.xlu0 0
    %83 = vperm.xlu0 %82, %v34
    %v84 = vpop.permute.xlu0 %83
    %87 = vset.pattern.permute.xlu0 0
    %88 = vperm.xlu0 %87, %v35
    %v89 = vpop.permute.xlu0 %88
    %92 = vset.pattern.permute.xlu0 0
    %93 = vperm.xlu0 %92, %v36
    %v94 = vpop.permute.xlu0 %93
    %97 = vset.pattern.permute.xlu0 0
    %98 = vperm.xlu0 %97, %v37
    %v99 = vpop.permute.xlu0 %98
    %v101 = vadd.f32 %v84, %v77
    %v102 = vadd.f32 %v89, %v78
    %v103 = vadd.f32 %v94, %v79
    %v104 = vadd.f32 %v99, %v80
    %105 = vset.pattern.permute.xlu0 1
    %106 = vperm.xlu0 %105, %v30
    %v107 = vpop.permute.xlu0 %106
    %109 = vset.pattern.permute.xlu0 1
    %110 = vperm.xlu0 %109, %v31
    %v111 = vpop.permute.xlu0 %110
    %113 = vset.pattern.permute.xlu0 1
    %114 = vperm.xlu0 %113, %v32
    %v115 = vpop.permute.xlu0 %114
    %117 = vset.pattern.permute.xlu0 1
    %118 = vperm.xlu0 %117, %v33
    %v119 = vpop.permute.xlu0 %118
    %v121 = vlaneseq
    %v122 = vshrl.u32 %v121, 7
    %v123 = vsub.s32 1, %v122
    %v124 = vrot.slane %v52, %v123
    %v125 = vmul.f32 %v107, %v124
    %v126 = vmul.f32 %v111, %v124
    %v127 = vmul.f32 %v115, %v124
    %v128 = vmul.f32 %v119, %v124
    %v129 = vadd.f32 %v101, %v125
    %v130 = vadd.f32 %v102, %v126
    %v131 = vadd.f32 %v103, %v127
    %v132 = vadd.f32 %v104, %v128
    %v133 = vmax.f32 %v129, 0.0
    %v134 = vmax.f32 %v130, 0.0
    %v135 = vmax.f32 %v131, 0.0
    %v136 = vmax.f32 %v132, 0.0
    %138 = vset.pattern.permute.xlu0 0
    %139 = vperm.xlu0 %138, %v42
    %v140 = vpop.permute.xlu0 %139
    %143 = vset.pattern.permute.xlu0 0
    %144 = vperm.xlu0 %143, %v43
    %v145 = vpop.permute.xlu0 %144
    %148 = vset.pattern.permute.xlu0 0
    %149 = vperm.xlu0 %148, %v44
    %v150 = vpop.permute.xlu0 %149
    %153 = vset.pattern.permute.xlu0 0
    %154 = vperm.xlu0 %153, %v45
    %v155 = vpop.permute.xlu0 %154
    %vm157 = vcmask 261120
    %v159 = vsel %vm157, %v38, 0
    %v162 = vsel %vm157, %v39, 0
    %v165 = vsel %vm157, %v40, 0
    %v168 = vsel %vm157, %v41, 0
    %170 = vmatprep.subr.mxu0 0.0
    %171 = vmatpush1.msra.mxu0 0.0
    %172 = vmatprep.subr.mxu0 0.0
    %173 = vmatpush1.msra.mxu0 0.0
    %174 = vmatprep.subr.mxu0 0.0
    %175 = vmatpush1.msra.mxu0 0.0
    %176 = vmatprep.subr.mxu0 0.0
    %177 = vmatpush1.msra.mxu0 0.0
    %178 = vmatprep.subr.mxu0 0.0
    %179 = vmatpush1.msra.mxu0 0.0
    %180 = vmatprep.subr.mxu0 0.0
    %181 = vmatpush1.msra.mxu0 0.0
    %182 = vmatprep.subr.mxu0 0.0
    %183 = vmatpush1.msra.mxu0 0.0
    %184 = vmatprep.subr.mxu0 0.0
    %185 = vmatpush1.msra.mxu0 0.0
    %186 = vmatprep.subr.mxu0 0.0
    %187 = vmatpush1.msra.mxu0 0.0
    %188 = vmatprep.subr.mxu0 0.0
    %189 = vmatpush1.msra.mxu0 0.0
    %190 = vmatprep.subr.mxu0 0.0
    %191 = vmatpush1.msra.mxu0 0.0
    %192 = vmatprep.subr.mxu0 0.0
    %193 = vmatpush1.msra.mxu0 0.0
    %194 = vmatprep.subr.mxu0 0.0
    %v195 = vand.u32 %v136, 4294901760
    %196 = vmatpush1.msra.mxu0 %v195
    %197 = vmatprep.subr.mxu0 0.0
    %v198 = vand.u32 %v135, 4294901760
    %199 = vmatpush1.msra.mxu0 %v198
    %200 = vmatprep.subr.mxu0 0.0
    %v201 = vand.u32 %v134, 4294901760
    %202 = vmatpush1.msra.mxu0 %v201
    %203 = vmatprep.subr.mxu0 0.0
    %v204 = vand.u32 %v133, 4294901760
    %205 = vmatpush1.msra.mxu0 %v204
    %206 = vmatprep.subr.mxu0 0.0
    %207 = vmatpush2.msra.mxu0 0.0
    %208 = vmatprep.subr.mxu0 0.0
    %209 = vmatpush2.msra.mxu0 0.0
    %210 = vmatprep.subr.mxu0 0.0
    %211 = vmatpush2.msra.mxu0 0.0
    %212 = vmatprep.subr.mxu0 0.0
    %213 = vmatpush2.msra.mxu0 0.0
    %214 = vmatprep.subr.mxu0 0.0
    %215 = vmatpush2.msra.mxu0 0.0
    %216 = vmatprep.subr.mxu0 0.0
    %217 = vmatpush2.msra.mxu0 0.0
    %218 = vmatprep.subr.mxu0 0.0
    %219 = vmatpush2.msra.mxu0 0.0
    %220 = vmatprep.subr.mxu0 0.0
    %221 = vmatpush2.msra.mxu0 0.0
    %222 = vmatprep.subr.mxu0 0.0
    %223 = vmatpush2.msra.mxu0 0.0
    %224 = vmatprep.subr.mxu0 0.0
    %225 = vmatpush2.msra.mxu0 0.0
    %226 = vmatprep.subr.mxu0 0.0
    %227 = vmatpush2.msra.mxu0 0.0
    %228 = vmatprep.subr.mxu0 0.0
    %229 = vmatpush2.msra.mxu0 0.0
    %230 = vmatprep.subr.mxu0 0.0
    %231 = vmatpush2.msra.mxu0 0.0
    %232 = vmatprep.subr.mxu0 0.0
    %233 = vmatpush2.msra.mxu0 0.0
    %234 = vmatprep.subr.mxu0 0.0
    %235 = vmatpush2.msra.mxu0 0.0
    %236 = vmatprep.subr.mxu0 0.0
    %237 = vmatpush2.msra.mxu0 0.0
    %238 = vmatprep.mubr.f32.mxu0 0.0
    %v239 = vand.u32 %v159, 4294901760
    %v240 = vsub.f32 %v159, %v239
    %v241 = vand.u32 %v240, 4294901760
    %v242 = vsub.f32 %v240, %v241
    %v243 = vand.u32 %v242, 4294901760
    %244 = vmatmul.mubr.f32.gmra.mxu0 %v243
    %v245 = vpop.f32.mrf.mxu0
    %v246 = vadd.f32 %v140, %v245
    %v247 = vpop.f32.mrf.mxu0
    %248 = vmatprep.mubr.f32.mxu0 0.0
    %v249 = vand.u32 %v162, 4294901760
    %v250 = vsub.f32 %v162, %v249
    %v251 = vand.u32 %v250, 4294901760
    %v252 = vsub.f32 %v250, %v251
    %v253 = vand.u32 %v252, 4294901760
    %254 = vmatmul.mubr.f32.gmra.mxu0 %v253
    %v255 = vpop.f32.mrf.mxu0
    %v256 = vadd.f32 %v145, %v255
    %v257 = vpop.f32.mrf.mxu0
    %258 = vmatprep.mubr.f32.mxu0 0.0
    %v259 = vand.u32 %v165, 4294901760
    %v260 = vsub.f32 %v165, %v259
    %v261 = vand.u32 %v260, 4294901760
    %v262 = vsub.f32 %v260, %v261
    %v263 = vand.u32 %v262, 4294901760
    %264 = vmatmul.mubr.f32.gmra.mxu0 %v263
    %v265 = vpop.f32.mrf.mxu0
    %v266 = vadd.f32 %v150, %v265
    %v267 = vpop.f32.mrf.mxu0
    %268 = vmatprep.mubr.f32.mxu0 0.0
    %v269 = vand.u32 %v168, 4294901760
    %v270 = vsub.f32 %v168, %v269
    %v271 = vand.u32 %v270, 4294901760
    %v272 = vsub.f32 %v270, %v271
    %v273 = vand.u32 %v272, 4294901760
    %274 = vmatmul.mubr.f32.gmra.mxu0 %v273
    %v275 = vpop.f32.mrf.mxu0
    %v276 = vadd.f32 %v155, %v275
    %v277 = vpop.f32.mrf.mxu0
    %278 = vdwg.mxu0
    %279 = vmatprep.subr.mxu0 0.0
    %280 = vmatpush1.msra.mxu0 0.0
    %281 = vmatprep.subr.mxu0 0.0
    %282 = vmatpush1.msra.mxu0 0.0
    %283 = vmatprep.subr.mxu0 0.0
    %284 = vmatpush1.msra.mxu0 0.0
    %285 = vmatprep.subr.mxu0 0.0
    %286 = vmatpush1.msra.mxu0 0.0
    %287 = vmatprep.subr.mxu0 0.0
    %288 = vmatpush1.msra.mxu0 0.0
    %289 = vmatprep.subr.mxu0 0.0
    %290 = vmatpush1.msra.mxu0 0.0
    %291 = vmatprep.subr.mxu0 0.0
    %292 = vmatpush1.msra.mxu0 0.0
    %293 = vmatprep.subr.mxu0 0.0
    %294 = vmatpush1.msra.mxu0 0.0
    %295 = vmatprep.subr.mxu0 0.0
    %296 = vmatpush1.msra.mxu0 0.0
    %297 = vmatprep.subr.mxu0 0.0
    %298 = vmatpush1.msra.mxu0 0.0
    %299 = vmatprep.subr.mxu0 0.0
    %300 = vmatpush1.msra.mxu0 0.0
    %301 = vmatprep.subr.mxu0 0.0
    %302 = vmatpush1.msra.mxu0 0.0
    %303 = vmatprep.subr.mxu0 0.0
    %v304 = vand.u32 %v136, 4294901760
    %v305 = vsub.f32 %v136, %v304
    %v306 = vand.u32 %v305, 4294901760
    %v307 = vsub.f32 %v305, %v306
    %v308 = vand.u32 %v307, 4294901760
    %309 = vmatpush1.msra.mxu0 %v308
    %310 = vmatprep.subr.mxu0 0.0
    %v311 = vand.u32 %v135, 4294901760
    %v312 = vsub.f32 %v135, %v311
    %v313 = vand.u32 %v312, 4294901760
    %v314 = vsub.f32 %v312, %v313
    %v315 = vand.u32 %v314, 4294901760
    %316 = vmatpush1.msra.mxu0 %v315
    %317 = vmatprep.subr.mxu0 0.0
    %v318 = vand.u32 %v134, 4294901760
    %v319 = vsub.f32 %v134, %v318
    %v320 = vand.u32 %v319, 4294901760
    %v321 = vsub.f32 %v319, %v320
    %v322 = vand.u32 %v321, 4294901760
    %323 = vmatpush1.msra.mxu0 %v322
    %324 = vmatprep.subr.mxu0 0.0
    %v325 = vand.u32 %v133, 4294901760
    %v326 = vsub.f32 %v133, %v325
    %v327 = vand.u32 %v326, 4294901760
    %v328 = vsub.f32 %v326, %v327
    %v329 = vand.u32 %v328, 4294901760
    %330 = vmatpush1.msra.mxu0 %v329
    %331 = vmatprep.subr.mxu0 0.0
    %332 = vmatpush2.msra.mxu0 0.0
    %333 = vmatprep.subr.mxu0 0.0
    %334 = vmatpush2.msra.mxu0 0.0
    %335 = vmatprep.subr.mxu0 0.0
    %336 = vmatpush2.msra.mxu0 0.0
    %337 = vmatprep.subr.mxu0 0.0
    %338 = vmatpush2.msra.mxu0 0.0
    %339 = vmatprep.subr.mxu0 0.0
    %340 = vmatpush2.msra.mxu0 0.0
    %341 = vmatprep.subr.mxu0 0.0
    %342 = vmatpush2.msra.mxu0 0.0
    %343 = vmatprep.subr.mxu0 0.0
    %344 = vmatpush2.msra.mxu0 0.0
    %345 = vmatprep.subr.mxu0 0.0
    %346 = vmatpush2.msra.mxu0 0.0
    %347 = vmatprep.subr.mxu0 0.0
    %348 = vmatpush2.msra.mxu0 0.0
    %349 = vmatprep.subr.mxu0 0.0
    %350 = vmatpush2.msra.mxu0 0.0
    %351 = vmatprep.subr.mxu0 0.0
    %352 = vmatpush2.msra.mxu0 0.0
    %353 = vmatprep.subr.mxu0 0.0
    %354 = vmatpush2.msra.mxu0 0.0
    %355 = vmatprep.subr.mxu0 0.0
    %356 = vmatpush2.msra.mxu0 0.0
    %357 = vmatprep.subr.mxu0 0.0
    %358 = vmatpush2.msra.mxu0 0.0
    %359 = vmatprep.subr.mxu0 0.0
    %360 = vmatpush2.msra.mxu0 0.0
    %361 = vmatprep.subr.mxu0 0.0
    %362 = vmatpush2.msra.mxu0 0.0
    %363 = vmatprep.mubr.f32.mxu0 0.0
    %v364 = vand.u32 %v159, 4294901760
    %365 = vmatmul.mubr.f32.gmra.mxu0 %v364
    %v366 = vpop.f32.mrf.mxu0
    %v367 = vadd.f32 %v246, %v366
    %v368 = vpop.f32.mrf.mxu0
    %369 = vmatprep.mubr.f32.mxu0 0.0
    %v370 = vand.u32 %v162, 4294901760
    %371 = vmatmul.mubr.f32.gmra.mxu0 %v370
    %v372 = vpop.f32.mrf.mxu0
    %v373 = vadd.f32 %v256, %v372
    %v374 = vpop.f32.mrf.mxu0
    %375 = vmatprep.mubr.f32.mxu0 0.0
    %v376 = vand.u32 %v165, 4294901760
    %377 = vmatmul.mubr.f32.gmra.mxu0 %v376
    %v378 = vpop.f32.mrf.mxu0
    %v379 = vadd.f32 %v266, %v378
    %v380 = vpop.f32.mrf.mxu0
    %381 = vmatprep.mubr.f32.mxu0 0.0
    %v382 = vand.u32 %v168, 4294901760
    %383 = vmatmul.mubr.f32.gmra.mxu0 %v382
    %v384 = vpop.f32.mrf.mxu0
    %v385 = vadd.f32 %v276, %v384
    %v386 = vpop.f32.mrf.mxu0
    %387 = vdwg.mxu0
    %388 = vmatprep.subr.mxu0 0.0
    %389 = vmatpush1.msra.mxu0 0.0
    %390 = vmatprep.subr.mxu0 0.0
    %391 = vmatpush1.msra.mxu0 0.0
    %392 = vmatprep.subr.mxu0 0.0
    %393 = vmatpush1.msra.mxu0 0.0
    %394 = vmatprep.subr.mxu0 0.0
    %395 = vmatpush1.msra.mxu0 0.0
    %396 = vmatprep.subr.mxu0 0.0
    %397 = vmatpush1.msra.mxu0 0.0
    %398 = vmatprep.subr.mxu0 0.0
    %399 = vmatpush1.msra.mxu0 0.0
    %400 = vmatprep.subr.mxu0 0.0
    %401 = vmatpush1.msra.mxu0 0.0
    %402 = vmatprep.subr.mxu0 0.0
    %403 = vmatpush1.msra.mxu0 0.0
    %404 = vmatprep.subr.mxu0 0.0
    %405 = vmatpush1.msra.mxu0 0.0
    %406 = vmatprep.subr.mxu0 0.0
    %407 = vmatpush1.msra.mxu0 0.0
    %408 = vmatprep.subr.mxu0 0.0
    %409 = vmatpush1.msra.mxu0 0.0
    %410 = vmatprep.subr.mxu0 0.0
    %411 = vmatpush1.msra.mxu0 0.0
    %412 = vmatprep.subr.mxu0 0.0
    %v413 = vand.u32 %v136, 4294901760
    %v414 = vsub.f32 %v136, %v413
    %415 = vmatpush1.msra.mxu0 %v414
    %416 = vmatprep.subr.mxu0 0.0
    %v417 = vand.u32 %v135, 4294901760
    %v418 = vsub.f32 %v135, %v417
    %419 = vmatpush1.msra.mxu0 %v418
    %420 = vmatprep.subr.mxu0 0.0
    %v421 = vand.u32 %v134, 4294901760
    %v422 = vsub.f32 %v134, %v421
    %423 = vmatpush1.msra.mxu0 %v422
    %424 = vmatprep.subr.mxu0 0.0
    %v425 = vand.u32 %v133, 4294901760
    %v426 = vsub.f32 %v133, %v425
    %427 = vmatpush1.msra.mxu0 %v426
    %428 = vmatprep.subr.mxu0 0.0
    %429 = vmatpush2.msra.mxu0 0.0
    %430 = vmatprep.subr.mxu0 0.0
    %431 = vmatpush2.msra.mxu0 0.0
    %432 = vmatprep.subr.mxu0 0.0
    %433 = vmatpush2.msra.mxu0 0.0
    %434 = vmatprep.subr.mxu0 0.0
    %435 = vmatpush2.msra.mxu0 0.0
    %436 = vmatprep.subr.mxu0 0.0
    %437 = vmatpush2.msra.mxu0 0.0
    %438 = vmatprep.subr.mxu0 0.0
    %439 = vmatpush2.msra.mxu0 0.0
    %440 = vmatprep.subr.mxu0 0.0
    %441 = vmatpush2.msra.mxu0 0.0
    %442 = vmatprep.subr.mxu0 0.0
    %443 = vmatpush2.msra.mxu0 0.0
    %444 = vmatprep.subr.mxu0 0.0
    %445 = vmatpush2.msra.mxu0 0.0
    %446 = vmatprep.subr.mxu0 0.0
    %447 = vmatpush2.msra.mxu0 0.0
    %448 = vmatprep.subr.mxu0 0.0
    %449 = vmatpush2.msra.mxu0 0.0
    %450 = vmatprep.subr.mxu0 0.0
    %451 = vmatpush2.msra.mxu0 0.0
    %452 = vmatprep.subr.mxu0 0.0
    %453 = vmatpush2.msra.mxu0 0.0
    %454 = vmatprep.subr.mxu0 0.0
    %455 = vmatpush2.msra.mxu0 0.0
    %456 = vmatprep.subr.mxu0 0.0
    %457 = vmatpush2.msra.mxu0 0.0
    %458 = vmatprep.subr.mxu0 0.0
    %459 = vmatpush2.msra.mxu0 0.0
    %460 = vmatprep.mubr.f32.mxu0 0.0
    %v461 = vand.u32 %v159, 4294901760
    %v462 = vsub.f32 %v159, %v461
    %463 = vmatmul.mubr.f32.gmra.mxu0 %v462
    %v464 = vpop.f32.mrf.mxu0
    %v465 = vadd.f32 %v367, %v464
    %v466 = vpop.f32.mrf.mxu0
    %467 = vmatprep.mubr.f32.mxu0 0.0
    %v468 = vand.u32 %v162, 4294901760
    %v469 = vsub.f32 %v162, %v468
    %470 = vmatmul.mubr.f32.gmra.mxu0 %v469
    %v471 = vpop.f32.mrf.mxu0
    %v472 = vadd.f32 %v373, %v471
    %v473 = vpop.f32.mrf.mxu0
    %474 = vmatprep.mubr.f32.mxu0 0.0
    %v475 = vand.u32 %v165, 4294901760
    %v476 = vsub.f32 %v165, %v475
    %477 = vmatmul.mubr.f32.gmra.mxu0 %v476
    %v478 = vpop.f32.mrf.mxu0
    %v479 = vadd.f32 %v379, %v478
    %v480 = vpop.f32.mrf.mxu0
    %481 = vmatprep.mubr.f32.mxu0 0.0
    %v482 = vand.u32 %v168, 4294901760
    %v483 = vsub.f32 %v168, %v482
    %484 = vmatmul.mubr.f32.gmra.mxu0 %v483
    %v485 = vpop.f32.mrf.mxu0
    %v486 = vadd.f32 %v385, %v485
    %v487 = vpop.f32.mrf.mxu0
    %488 = vdwg.mxu0
    %489 = vmatprep.subr.mxu0 0.0
    %490 = vmatpush1.msra.mxu0 0.0
    %491 = vmatprep.subr.mxu0 0.0
    %492 = vmatpush1.msra.mxu0 0.0
    %493 = vmatprep.subr.mxu0 0.0
    %494 = vmatpush1.msra.mxu0 0.0
    %495 = vmatprep.subr.mxu0 0.0
    %496 = vmatpush1.msra.mxu0 0.0
    %497 = vmatprep.subr.mxu0 0.0
    %498 = vmatpush1.msra.mxu0 0.0
    %499 = vmatprep.subr.mxu0 0.0
    %500 = vmatpush1.msra.mxu0 0.0
    %501 = vmatprep.subr.mxu0 0.0
    %502 = vmatpush1.msra.mxu0 0.0
    %503 = vmatprep.subr.mxu0 0.0
    %504 = vmatpush1.msra.mxu0 0.0
    %505 = vmatprep.subr.mxu0 0.0
    %506 = vmatpush1.msra.mxu0 0.0
    %507 = vmatprep.subr.mxu0 0.0
    %508 = vmatpush1.msra.mxu0 0.0
    %509 = vmatprep.subr.mxu0 0.0
    %510 = vmatpush1.msra.mxu0 0.0
    %511 = vmatprep.subr.mxu0 0.0
    %512 = vmatpush1.msra.mxu0 0.0
    %513 = vmatprep.subr.mxu0 0.0
    %v514 = vand.u32 %v136, 4294901760
    %515 = vmatpush1.msra.mxu0 %v514
    %516 = vmatprep.subr.mxu0 0.0
    %v517 = vand.u32 %v135, 4294901760
    %518 = vmatpush1.msra.mxu0 %v517
    %519 = vmatprep.subr.mxu0 0.0
    %v520 = vand.u32 %v134, 4294901760
    %521 = vmatpush1.msra.mxu0 %v520
    %522 = vmatprep.subr.mxu0 0.0
    %v523 = vand.u32 %v133, 4294901760
    %524 = vmatpush1.msra.mxu0 %v523
    %525 = vmatprep.subr.mxu0 0.0
    %526 = vmatpush2.msra.mxu0 0.0
    %527 = vmatprep.subr.mxu0 0.0
    %528 = vmatpush2.msra.mxu0 0.0
    %529 = vmatprep.subr.mxu0 0.0
    %530 = vmatpush2.msra.mxu0 0.0
    %531 = vmatprep.subr.mxu0 0.0
    %532 = vmatpush2.msra.mxu0 0.0
    %533 = vmatprep.subr.mxu0 0.0
    %534 = vmatpush2.msra.mxu0 0.0
    %535 = vmatprep.subr.mxu0 0.0
    %536 = vmatpush2.msra.mxu0 0.0
    %537 = vmatprep.subr.mxu0 0.0
    %538 = vmatpush2.msra.mxu0 0.0
    %539 = vmatprep.subr.mxu0 0.0
    %540 = vmatpush2.msra.mxu0 0.0
    %541 = vmatprep.subr.mxu0 0.0
    %542 = vmatpush2.msra.mxu0 0.0
    %543 = vmatprep.subr.mxu0 0.0
    %544 = vmatpush2.msra.mxu0 0.0
    %545 = vmatprep.subr.mxu0 0.0
    %546 = vmatpush2.msra.mxu0 0.0
    %547 = vmatprep.subr.mxu0 0.0
    %548 = vmatpush2.msra.mxu0 0.0
    %549 = vmatprep.subr.mxu0 0.0
    %550 = vmatpush2.msra.mxu0 0.0
    %551 = vmatprep.subr.mxu0 0.0
    %552 = vmatpush2.msra.mxu0 0.0
    %553 = vmatprep.subr.mxu0 0.0
    %554 = vmatpush2.msra.mxu0 0.0
    %555 = vmatprep.subr.mxu0 0.0
    %556 = vmatpush2.msra.mxu0 0.0
    %557 = vmatprep.mubr.f32.mxu0 0.0
    %v558 = vand.u32 %v159, 4294901760
    %v559 = vsub.f32 %v159, %v558
    %v560 = vand.u32 %v559, 4294901760
    %561 = vmatmul.mubr.f32.gmra.mxu0 %v560
    %v562 = vpop.f32.mrf.mxu0
    %v563 = vadd.f32 %v465, %v562
    %v564 = vpop.f32.mrf.mxu0
    %565 = vmatprep.mubr.f32.mxu0 0.0
    %v566 = vand.u32 %v162, 4294901760
    %v567 = vsub.f32 %v162, %v566
    %v568 = vand.u32 %v567, 4294901760
    %569 = vmatmul.mubr.f32.gmra.mxu0 %v568
    %v570 = vpop.f32.mrf.mxu0
    %v571 = vadd.f32 %v472, %v570
    %v572 = vpop.f32.mrf.mxu0
    %573 = vmatprep.mubr.f32.mxu0 0.0
    %v574 = vand.u32 %v165, 4294901760
    %v575 = vsub.f32 %v165, %v574
    %v576 = vand.u32 %v575, 4294901760
    %577 = vmatmul.mubr.f32.gmra.mxu0 %v576
    %v578 = vpop.f32.mrf.mxu0
    %v579 = vadd.f32 %v479, %v578
    %v580 = vpop.f32.mrf.mxu0
    %581 = vmatprep.mubr.f32.mxu0 0.0
    %v582 = vand.u32 %v168, 4294901760
    %v583 = vsub.f32 %v168, %v582
    %v584 = vand.u32 %v583, 4294901760
    %585 = vmatmul.mubr.f32.gmra.mxu0 %v584
    %v586 = vpop.f32.mrf.mxu0
    %v587 = vadd.f32 %v486, %v586
    %v588 = vpop.f32.mrf.mxu0
    %589 = vdwg.mxu0
    %590 = vmatprep.subr.mxu0 0.0
    %591 = vmatpush1.msra.mxu0 0.0
    %592 = vmatprep.subr.mxu0 0.0
    %593 = vmatpush1.msra.mxu0 0.0
    %594 = vmatprep.subr.mxu0 0.0
    %595 = vmatpush1.msra.mxu0 0.0
    %596 = vmatprep.subr.mxu0 0.0
    %597 = vmatpush1.msra.mxu0 0.0
    %598 = vmatprep.subr.mxu0 0.0
    %599 = vmatpush1.msra.mxu0 0.0
    %600 = vmatprep.subr.mxu0 0.0
    %601 = vmatpush1.msra.mxu0 0.0
    %602 = vmatprep.subr.mxu0 0.0
    %603 = vmatpush1.msra.mxu0 0.0
    %604 = vmatprep.subr.mxu0 0.0
    %605 = vmatpush1.msra.mxu0 0.0
    %606 = vmatprep.subr.mxu0 0.0
    %607 = vmatpush1.msra.mxu0 0.0
    %608 = vmatprep.subr.mxu0 0.0
    %609 = vmatpush1.msra.mxu0 0.0
    %610 = vmatprep.subr.mxu0 0.0
    %611 = vmatpush1.msra.mxu0 0.0
    %612 = vmatprep.subr.mxu0 0.0
    %613 = vmatpush1.msra.mxu0 0.0
    %614 = vmatprep.subr.mxu0 0.0
    %v615 = vand.u32 %v136, 4294901760
    %v616 = vsub.f32 %v136, %v615
    %v617 = vand.u32 %v616, 4294901760
    %618 = vmatpush1.msra.mxu0 %v617
    %619 = vmatprep.subr.mxu0 0.0
    %v620 = vand.u32 %v135, 4294901760
    %v621 = vsub.f32 %v135, %v620
    %v622 = vand.u32 %v621, 4294901760
    %623 = vmatpush1.msra.mxu0 %v622
    %624 = vmatprep.subr.mxu0 0.0
    %v625 = vand.u32 %v134, 4294901760
    %v626 = vsub.f32 %v134, %v625
    %v627 = vand.u32 %v626, 4294901760
    %628 = vmatpush1.msra.mxu0 %v627
    %629 = vmatprep.subr.mxu0 0.0
    %v630 = vand.u32 %v133, 4294901760
    %v631 = vsub.f32 %v133, %v630
    %v632 = vand.u32 %v631, 4294901760
    %633 = vmatpush1.msra.mxu0 %v632
    %634 = vmatprep.subr.mxu0 0.0
    %635 = vmatpush2.msra.mxu0 0.0
    %636 = vmatprep.subr.mxu0 0.0
    %637 = vmatpush2.msra.mxu0 0.0
    %638 = vmatprep.subr.mxu0 0.0
    %639 = vmatpush2.msra.mxu0 0.0
    %640 = vmatprep.subr.mxu0 0.0
    %641 = vmatpush2.msra.mxu0 0.0
    %642 = vmatprep.subr.mxu0 0.0
    %643 = vmatpush2.msra.mxu0 0.0
    %644 = vmatprep.subr.mxu0 0.0
    %645 = vmatpush2.msra.mxu0 0.0
    %646 = vmatprep.subr.mxu0 0.0
    %647 = vmatpush2.msra.mxu0 0.0
    %648 = vmatprep.subr.mxu0 0.0
    %649 = vmatpush2.msra.mxu0 0.0
    %650 = vmatprep.subr.mxu0 0.0
    %651 = vmatpush2.msra.mxu0 0.0
    %652 = vmatprep.subr.mxu0 0.0
    %653 = vmatpush2.msra.mxu0 0.0
    %654 = vmatprep.subr.mxu0 0.0
    %655 = vmatpush2.msra.mxu0 0.0
    %656 = vmatprep.subr.mxu0 0.0
    %657 = vmatpush2.msra.mxu0 0.0
    %658 = vmatprep.subr.mxu0 0.0
    %659 = vmatpush2.msra.mxu0 0.0
    %660 = vmatprep.subr.mxu0 0.0
    %661 = vmatpush2.msra.mxu0 0.0
    %662 = vmatprep.subr.mxu0 0.0
    %663 = vmatpush2.msra.mxu0 0.0
    %664 = vmatprep.subr.mxu0 0.0
    %665 = vmatpush2.msra.mxu0 0.0
    %666 = vmatprep.mubr.f32.mxu0 0.0
    %v667 = vand.u32 %v159, 4294901760
    %668 = vmatmul.mubr.f32.gmra.mxu0 %v667
    %v669 = vpop.f32.mrf.mxu0
    %v670 = vadd.f32 %v563, %v669
    %v671 = vpop.f32.mrf.mxu0
    %672 = vmatprep.mubr.f32.mxu0 0.0
    %v673 = vand.u32 %v162, 4294901760
    %674 = vmatmul.mubr.f32.gmra.mxu0 %v673
    %v675 = vpop.f32.mrf.mxu0
    %v676 = vadd.f32 %v571, %v675
    %v677 = vpop.f32.mrf.mxu0
    %678 = vmatprep.mubr.f32.mxu0 0.0
    %v679 = vand.u32 %v165, 4294901760
    %680 = vmatmul.mubr.f32.gmra.mxu0 %v679
    %v681 = vpop.f32.mrf.mxu0
    %v682 = vadd.f32 %v579, %v681
    %v683 = vpop.f32.mrf.mxu0
    %684 = vmatprep.mubr.f32.mxu0 0.0
    %v685 = vand.u32 %v168, 4294901760
    %686 = vmatmul.mubr.f32.gmra.mxu0 %v685
    %v687 = vpop.f32.mrf.mxu0
    %v688 = vadd.f32 %v587, %v687
    %v689 = vpop.f32.mrf.mxu0
    %690 = vdwg.mxu0
    %691 = vmatprep.subr.mxu0 0.0
    %692 = vmatpush1.msra.mxu0 0.0
    %693 = vmatprep.subr.mxu0 0.0
    %694 = vmatpush1.msra.mxu0 0.0
    %695 = vmatprep.subr.mxu0 0.0
    %696 = vmatpush1.msra.mxu0 0.0
    %697 = vmatprep.subr.mxu0 0.0
    %698 = vmatpush1.msra.mxu0 0.0
    %699 = vmatprep.subr.mxu0 0.0
    %700 = vmatpush1.msra.mxu0 0.0
    %701 = vmatprep.subr.mxu0 0.0
    %702 = vmatpush1.msra.mxu0 0.0
    %703 = vmatprep.subr.mxu0 0.0
    %704 = vmatpush1.msra.mxu0 0.0
    %705 = vmatprep.subr.mxu0 0.0
    %706 = vmatpush1.msra.mxu0 0.0
    %707 = vmatprep.subr.mxu0 0.0
    %708 = vmatpush1.msra.mxu0 0.0
    %709 = vmatprep.subr.mxu0 0.0
    %710 = vmatpush1.msra.mxu0 0.0
    %711 = vmatprep.subr.mxu0 0.0
    %712 = vmatpush1.msra.mxu0 0.0
    %713 = vmatprep.subr.mxu0 0.0
    %714 = vmatpush1.msra.mxu0 0.0
    %715 = vmatprep.subr.mxu0 0.0
    %v716 = vand.u32 %v136, 4294901760
    %717 = vmatpush1.msra.mxu0 %v716
    %718 = vmatprep.subr.mxu0 0.0
    %v719 = vand.u32 %v135, 4294901760
    %720 = vmatpush1.msra.mxu0 %v719
    %721 = vmatprep.subr.mxu0 0.0
    %v722 = vand.u32 %v134, 4294901760
    %723 = vmatpush1.msra.mxu0 %v722
    %724 = vmatprep.subr.mxu0 0.0
    %v725 = vand.u32 %v133, 4294901760
    %726 = vmatpush1.msra.mxu0 %v725
    %727 = vmatprep.subr.mxu0 0.0
    %728 = vmatpush2.msra.mxu0 0.0
    %729 = vmatprep.subr.mxu0 0.0
    %730 = vmatpush2.msra.mxu0 0.0
    %731 = vmatprep.subr.mxu0 0.0
    %732 = vmatpush2.msra.mxu0 0.0
    %733 = vmatprep.subr.mxu0 0.0
    %734 = vmatpush2.msra.mxu0 0.0
    %735 = vmatprep.subr.mxu0 0.0
    %736 = vmatpush2.msra.mxu0 0.0
    %737 = vmatprep.subr.mxu0 0.0
    %738 = vmatpush2.msra.mxu0 0.0
    %739 = vmatprep.subr.mxu0 0.0
    %740 = vmatpush2.msra.mxu0 0.0
    %741 = vmatprep.subr.mxu0 0.0
    %742 = vmatpush2.msra.mxu0 0.0
    %743 = vmatprep.subr.mxu0 0.0
    %744 = vmatpush2.msra.mxu0 0.0
    %745 = vmatprep.subr.mxu0 0.0
    %746 = vmatpush2.msra.mxu0 0.0
    %747 = vmatprep.subr.mxu0 0.0
    %748 = vmatpush2.msra.mxu0 0.0
    %749 = vmatprep.subr.mxu0 0.0
    %750 = vmatpush2.msra.mxu0 0.0
    %751 = vmatprep.subr.mxu0 0.0
    %752 = vmatpush2.msra.mxu0 0.0
    %753 = vmatprep.subr.mxu0 0.0
    %754 = vmatpush2.msra.mxu0 0.0
    %755 = vmatprep.subr.mxu0 0.0
    %756 = vmatpush2.msra.mxu0 0.0
    %757 = vmatprep.subr.mxu0 0.0
    %758 = vmatpush2.msra.mxu0 0.0
    %759 = vmatprep.mubr.f32.mxu0 0.0
    %v760 = vand.u32 %v159, 4294901760
    %761 = vmatmul.mubr.f32.gmra.mxu0 %v760
    %v762 = vpop.f32.mrf.mxu0
    %v763 = vadd.f32 %v670, %v762
    %v764 = vpop.f32.mrf.mxu0
    %765 = vmatprep.mubr.f32.mxu0 0.0
    %v766 = vand.u32 %v162, 4294901760
    %767 = vmatmul.mubr.f32.gmra.mxu0 %v766
    %v768 = vpop.f32.mrf.mxu0
    %v769 = vadd.f32 %v676, %v768
    %v770 = vpop.f32.mrf.mxu0
    %771 = vmatprep.mubr.f32.mxu0 0.0
    %v772 = vand.u32 %v165, 4294901760
    %773 = vmatmul.mubr.f32.gmra.mxu0 %v772
    %v774 = vpop.f32.mrf.mxu0
    %v775 = vadd.f32 %v682, %v774
    %v776 = vpop.f32.mrf.mxu0
    %777 = vmatprep.mubr.f32.mxu0 0.0
    %v778 = vand.u32 %v168, 4294901760
    %779 = vmatmul.mubr.f32.gmra.mxu0 %v778
    %v780 = vpop.f32.mrf.mxu0
    %v781 = vadd.f32 %v688, %v780
    %v782 = vpop.f32.mrf.mxu0
    %783 = vdwg.mxu0
    %v784 = vmax.f32 %v763, 0.0
    %v785 = vmax.f32 %v769, 0.0
    %v786 = vmax.f32 %v775, 0.0
    %v787 = vmax.f32 %v781, 0.0
    %789 = vset.pattern.permute.xlu0 0
    %790 = vperm.xlu0 %789, %v48
    %v791 = vpop.permute.xlu0 %790
    %794 = vset.pattern.permute.xlu0 0
    %795 = vperm.xlu0 %794, %v49
    %v796 = vpop.permute.xlu0 %795
    %v799 = vsel %vm157, %v46, 0
    %v802 = vsel %vm157, %v47, 0
    %804 = vmatprep.subr.mxu0 0.0
    %805 = vmatpush1.msra.mxu0 0.0
    %806 = vmatprep.subr.mxu0 0.0
    %807 = vmatpush1.msra.mxu0 0.0
    %808 = vmatprep.subr.mxu0 0.0
    %809 = vmatpush1.msra.mxu0 0.0
    %810 = vmatprep.subr.mxu0 0.0
    %811 = vmatpush1.msra.mxu0 0.0
    %812 = vmatprep.subr.mxu0 0.0
    %813 = vmatpush1.msra.mxu0 0.0
    %814 = vmatprep.subr.mxu0 0.0
    %815 = vmatpush1.msra.mxu0 0.0
    %816 = vmatprep.subr.mxu0 0.0
    %817 = vmatpush1.msra.mxu0 0.0
    %818 = vmatprep.subr.mxu0 0.0
    %819 = vmatpush1.msra.mxu0 0.0
    %820 = vmatprep.subr.mxu0 0.0
    %821 = vmatpush1.msra.mxu0 0.0
    %822 = vmatprep.subr.mxu0 0.0
    %823 = vmatpush1.msra.mxu0 0.0
    %824 = vmatprep.subr.mxu0 0.0
    %825 = vmatpush1.msra.mxu0 0.0
    %826 = vmatprep.subr.mxu0 0.0
    %827 = vmatpush1.msra.mxu0 0.0
    %828 = vmatprep.subr.mxu0 0.0
    %v829 = vand.u32 %v787, 4294901760
    %830 = vmatpush1.msra.mxu0 %v829
    %831 = vmatprep.subr.mxu0 0.0
    %v832 = vand.u32 %v786, 4294901760
    %833 = vmatpush1.msra.mxu0 %v832
    %834 = vmatprep.subr.mxu0 0.0
    %v835 = vand.u32 %v785, 4294901760
    %836 = vmatpush1.msra.mxu0 %v835
    %837 = vmatprep.subr.mxu0 0.0
    %v838 = vand.u32 %v784, 4294901760
    %839 = vmatpush1.msra.mxu0 %v838
    %840 = vmatprep.subr.mxu0 0.0
    %841 = vmatpush2.msra.mxu0 0.0
    %842 = vmatprep.subr.mxu0 0.0
    %843 = vmatpush2.msra.mxu0 0.0
    %844 = vmatprep.subr.mxu0 0.0
    %845 = vmatpush2.msra.mxu0 0.0
    %846 = vmatprep.subr.mxu0 0.0
    %847 = vmatpush2.msra.mxu0 0.0
    %848 = vmatprep.subr.mxu0 0.0
    %849 = vmatpush2.msra.mxu0 0.0
    %850 = vmatprep.subr.mxu0 0.0
    %851 = vmatpush2.msra.mxu0 0.0
    %852 = vmatprep.subr.mxu0 0.0
    %853 = vmatpush2.msra.mxu0 0.0
    %854 = vmatprep.subr.mxu0 0.0
    %855 = vmatpush2.msra.mxu0 0.0
    %856 = vmatprep.subr.mxu0 0.0
    %857 = vmatpush2.msra.mxu0 0.0
    %858 = vmatprep.subr.mxu0 0.0
    %859 = vmatpush2.msra.mxu0 0.0
    %860 = vmatprep.subr.mxu0 0.0
    %861 = vmatpush2.msra.mxu0 0.0
    %862 = vmatprep.subr.mxu0 0.0
    %863 = vmatpush2.msra.mxu0 0.0
    %864 = vmatprep.subr.mxu0 0.0
    %865 = vmatpush2.msra.mxu0 0.0
    %866 = vmatprep.subr.mxu0 0.0
    %867 = vmatpush2.msra.mxu0 0.0
    %868 = vmatprep.subr.mxu0 0.0
    %869 = vmatpush2.msra.mxu0 0.0
    %870 = vmatprep.subr.mxu0 0.0
    %871 = vmatpush2.msra.mxu0 0.0
    %872 = vmatprep.mubr.f32.mxu0 0.0
    %v873 = vand.u32 %v799, 4294901760
    %v874 = vsub.f32 %v799, %v873
    %v875 = vand.u32 %v874, 4294901760
    %v876 = vsub.f32 %v874, %v875
    %v877 = vand.u32 %v876, 4294901760
    %878 = vmatmul.mubr.f32.gmra.mxu0 %v877
    %v879 = vpop.f32.mrf.mxu0
    %v880 = vadd.f32 %v791, %v879
    %v881 = vpop.f32.mrf.mxu0
    %882 = vmatprep.mubr.f32.mxu0 0.0
    %v883 = vand.u32 %v802, 4294901760
    %v884 = vsub.f32 %v802, %v883
    %v885 = vand.u32 %v884, 4294901760
    %v886 = vsub.f32 %v884, %v885
    %v887 = vand.u32 %v886, 4294901760
    %888 = vmatmul.mubr.f32.gmra.mxu0 %v887
    %v889 = vpop.f32.mrf.mxu0
    %v890 = vadd.f32 %v796, %v889
    %v891 = vpop.f32.mrf.mxu0
    %892 = vdwg.mxu0
    %893 = vmatprep.subr.mxu0 0.0
    %894 = vmatpush1.msra.mxu0 0.0
    %895 = vmatprep.subr.mxu0 0.0
    %896 = vmatpush1.msra.mxu0 0.0
    %897 = vmatprep.subr.mxu0 0.0
    %898 = vmatpush1.msra.mxu0 0.0
    %899 = vmatprep.subr.mxu0 0.0
    %900 = vmatpush1.msra.mxu0 0.0
    %901 = vmatprep.subr.mxu0 0.0
    %902 = vmatpush1.msra.mxu0 0.0
    %903 = vmatprep.subr.mxu0 0.0
    %904 = vmatpush1.msra.mxu0 0.0
    %905 = vmatprep.subr.mxu0 0.0
    %906 = vmatpush1.msra.mxu0 0.0
    %907 = vmatprep.subr.mxu0 0.0
    %908 = vmatpush1.msra.mxu0 0.0
    %909 = vmatprep.subr.mxu0 0.0
    %910 = vmatpush1.msra.mxu0 0.0
    %911 = vmatprep.subr.mxu0 0.0
    %912 = vmatpush1.msra.mxu0 0.0
    %913 = vmatprep.subr.mxu0 0.0
    %914 = vmatpush1.msra.mxu0 0.0
    %915 = vmatprep.subr.mxu0 0.0
    %916 = vmatpush1.msra.mxu0 0.0
    %917 = vmatprep.subr.mxu0 0.0
    %v918 = vand.u32 %v787, 4294901760
    %v919 = vsub.f32 %v787, %v918
    %v920 = vand.u32 %v919, 4294901760
    %v921 = vsub.f32 %v919, %v920
    %v922 = vand.u32 %v921, 4294901760
    %923 = vmatpush1.msra.mxu0 %v922
    %924 = vmatprep.subr.mxu0 0.0
    %v925 = vand.u32 %v786, 4294901760
    %v926 = vsub.f32 %v786, %v925
    %v927 = vand.u32 %v926, 4294901760
    %v928 = vsub.f32 %v926, %v927
    %v929 = vand.u32 %v928, 4294901760
    %930 = vmatpush1.msra.mxu0 %v929
    %931 = vmatprep.subr.mxu0 0.0
    %v932 = vand.u32 %v785, 4294901760
    %v933 = vsub.f32 %v785, %v932
    %v934 = vand.u32 %v933, 4294901760
    %v935 = vsub.f32 %v933, %v934
    %v936 = vand.u32 %v935, 4294901760
    %937 = vmatpush1.msra.mxu0 %v936
    %938 = vmatprep.subr.mxu0 0.0
    %v939 = vand.u32 %v784, 4294901760
    %v940 = vsub.f32 %v784, %v939
    %v941 = vand.u32 %v940, 4294901760
    %v942 = vsub.f32 %v940, %v941
    %v943 = vand.u32 %v942, 4294901760
    %944 = vmatpush1.msra.mxu0 %v943
    %945 = vmatprep.subr.mxu0 0.0
    %946 = vmatpush2.msra.mxu0 0.0
    %947 = vmatprep.subr.mxu0 0.0
    %948 = vmatpush2.msra.mxu0 0.0
    %949 = vmatprep.subr.mxu0 0.0
    %950 = vmatpush2.msra.mxu0 0.0
    %951 = vmatprep.subr.mxu0 0.0
    %952 = vmatpush2.msra.mxu0 0.0
    %953 = vmatprep.subr.mxu0 0.0
    %954 = vmatpush2.msra.mxu0 0.0
    %955 = vmatprep.subr.mxu0 0.0
    %956 = vmatpush2.msra.mxu0 0.0
    %957 = vmatprep.subr.mxu0 0.0
    %958 = vmatpush2.msra.mxu0 0.0
    %959 = vmatprep.subr.mxu0 0.0
    %960 = vmatpush2.msra.mxu0 0.0
    %961 = vmatprep.subr.mxu0 0.0
    %962 = vmatpush2.msra.mxu0 0.0
    %963 = vmatprep.subr.mxu0 0.0
    %964 = vmatpush2.msra.mxu0 0.0
    %965 = vmatprep.subr.mxu0 0.0
    %966 = vmatpush2.msra.mxu0 0.0
    %967 = vmatprep.subr.mxu0 0.0
    %968 = vmatpush2.msra.mxu0 0.0
    %969 = vmatprep.subr.mxu0 0.0
    %970 = vmatpush2.msra.mxu0 0.0
    %971 = vmatprep.subr.mxu0 0.0
    %972 = vmatpush2.msra.mxu0 0.0
    %973 = vmatprep.subr.mxu0 0.0
    %974 = vmatpush2.msra.mxu0 0.0
    %975 = vmatprep.subr.mxu0 0.0
    %976 = vmatpush2.msra.mxu0 0.0
    %977 = vmatprep.mubr.f32.mxu0 0.0
    %v978 = vand.u32 %v799, 4294901760
    %979 = vmatmul.mubr.f32.gmra.mxu0 %v978
    %v980 = vpop.f32.mrf.mxu0
    %v981 = vadd.f32 %v880, %v980
    %v982 = vpop.f32.mrf.mxu0
    %983 = vmatprep.mubr.f32.mxu0 0.0
    %v984 = vand.u32 %v802, 4294901760
    %985 = vmatmul.mubr.f32.gmra.mxu0 %v984
    %v986 = vpop.f32.mrf.mxu0
    %v987 = vadd.f32 %v890, %v986
    %v988 = vpop.f32.mrf.mxu0
    %989 = vdwg.mxu0
    %990 = vmatprep.subr.mxu0 0.0
    %991 = vmatpush1.msra.mxu0 0.0
    %992 = vmatprep.subr.mxu0 0.0
    %993 = vmatpush1.msra.mxu0 0.0
    %994 = vmatprep.subr.mxu0 0.0
    %995 = vmatpush1.msra.mxu0 0.0
    %996 = vmatprep.subr.mxu0 0.0
    %997 = vmatpush1.msra.mxu0 0.0
    %998 = vmatprep.subr.mxu0 0.0
    %999 = vmatpush1.msra.mxu0 0.0
    %1000 = vmatprep.subr.mxu0 0.0
    %1001 = vmatpush1.msra.mxu0 0.0
    %1002 = vmatprep.subr.mxu0 0.0
    %1003 = vmatpush1.msra.mxu0 0.0
    %1004 = vmatprep.subr.mxu0 0.0
    %1005 = vmatpush1.msra.mxu0 0.0
    %1006 = vmatprep.subr.mxu0 0.0
    %1007 = vmatpush1.msra.mxu0 0.0
    %1008 = vmatprep.subr.mxu0 0.0
    %1009 = vmatpush1.msra.mxu0 0.0
    %1010 = vmatprep.subr.mxu0 0.0
    %1011 = vmatpush1.msra.mxu0 0.0
    %1012 = vmatprep.subr.mxu0 0.0
    %1013 = vmatpush1.msra.mxu0 0.0
    %1014 = vmatprep.subr.mxu0 0.0
    %v1015 = vand.u32 %v787, 4294901760
    %v1016 = vsub.f32 %v787, %v1015
    %1017 = vmatpush1.msra.mxu0 %v1016
    %1018 = vmatprep.subr.mxu0 0.0
    %v1019 = vand.u32 %v786, 4294901760
    %v1020 = vsub.f32 %v786, %v1019
    %1021 = vmatpush1.msra.mxu0 %v1020
    %1022 = vmatprep.subr.mxu0 0.0
    %v1023 = vand.u32 %v785, 4294901760
    %v1024 = vsub.f32 %v785, %v1023
    %1025 = vmatpush1.msra.mxu0 %v1024
    %1026 = vmatprep.subr.mxu0 0.0
    %v1027 = vand.u32 %v784, 4294901760
    %v1028 = vsub.f32 %v784, %v1027
    %1029 = vmatpush1.msra.mxu0 %v1028
    %1030 = vmatprep.subr.mxu0 0.0
    %1031 = vmatpush2.msra.mxu0 0.0
    %1032 = vmatprep.subr.mxu0 0.0
    %1033 = vmatpush2.msra.mxu0 0.0
    %1034 = vmatprep.subr.mxu0 0.0
    %1035 = vmatpush2.msra.mxu0 0.0
    %1036 = vmatprep.subr.mxu0 0.0
    %1037 = vmatpush2.msra.mxu0 0.0
    %1038 = vmatprep.subr.mxu0 0.0
    %1039 = vmatpush2.msra.mxu0 0.0
    %1040 = vmatprep.subr.mxu0 0.0
    %1041 = vmatpush2.msra.mxu0 0.0
    %1042 = vmatprep.subr.mxu0 0.0
    %1043 = vmatpush2.msra.mxu0 0.0
    %1044 = vmatprep.subr.mxu0 0.0
    %1045 = vmatpush2.msra.mxu0 0.0
    %1046 = vmatprep.subr.mxu0 0.0
    %1047 = vmatpush2.msra.mxu0 0.0
    %1048 = vmatprep.subr.mxu0 0.0
    %1049 = vmatpush2.msra.mxu0 0.0
    %1050 = vmatprep.subr.mxu0 0.0
    %1051 = vmatpush2.msra.mxu0 0.0
    %1052 = vmatprep.subr.mxu0 0.0
    %1053 = vmatpush2.msra.mxu0 0.0
    %1054 = vmatprep.subr.mxu0 0.0
    %1055 = vmatpush2.msra.mxu0 0.0
    %1056 = vmatprep.subr.mxu0 0.0
    %1057 = vmatpush2.msra.mxu0 0.0
    %1058 = vmatprep.subr.mxu0 0.0
    %1059 = vmatpush2.msra.mxu0 0.0
    %1060 = vmatprep.subr.mxu0 0.0
    %1061 = vmatpush2.msra.mxu0 0.0
    %1062 = vmatprep.mubr.f32.mxu0 0.0
    %v1063 = vand.u32 %v799, 4294901760
    %v1064 = vsub.f32 %v799, %v1063
    %1065 = vmatmul.mubr.f32.gmra.mxu0 %v1064
    %v1066 = vpop.f32.mrf.mxu0
    %v1067 = vadd.f32 %v981, %v1066
    %v1068 = vpop.f32.mrf.mxu0
    %1069 = vmatprep.mubr.f32.mxu0 0.0
    %v1070 = vand.u32 %v802, 4294901760
    %v1071 = vsub.f32 %v802, %v1070
    %1072 = vmatmul.mubr.f32.gmra.mxu0 %v1071
    %v1073 = vpop.f32.mrf.mxu0
    %v1074 = vadd.f32 %v987, %v1073
    %v1075 = vpop.f32.mrf.mxu0
    %1076 = vdwg.mxu0
    %1077 = vmatprep.subr.mxu0 0.0
    %1078 = vmatpush1.msra.mxu0 0.0
    %1079 = vmatprep.subr.mxu0 0.0
    %1080 = vmatpush1.msra.mxu0 0.0
    %1081 = vmatprep.subr.mxu0 0.0
    %1082 = vmatpush1.msra.mxu0 0.0
    %1083 = vmatprep.subr.mxu0 0.0
    %1084 = vmatpush1.msra.mxu0 0.0
    %1085 = vmatprep.subr.mxu0 0.0
    %1086 = vmatpush1.msra.mxu0 0.0
    %1087 = vmatprep.subr.mxu0 0.0
    %1088 = vmatpush1.msra.mxu0 0.0
    %1089 = vmatprep.subr.mxu0 0.0
    %1090 = vmatpush1.msra.mxu0 0.0
    %1091 = vmatprep.subr.mxu0 0.0
    %1092 = vmatpush1.msra.mxu0 0.0
    %1093 = vmatprep.subr.mxu0 0.0
    %1094 = vmatpush1.msra.mxu0 0.0
    %1095 = vmatprep.subr.mxu0 0.0
    %1096 = vmatpush1.msra.mxu0 0.0
    %1097 = vmatprep.subr.mxu0 0.0
    %1098 = vmatpush1.msra.mxu0 0.0
    %1099 = vmatprep.subr.mxu0 0.0
    %1100 = vmatpush1.msra.mxu0 0.0
    %1101 = vmatprep.subr.mxu0 0.0
    %v1102 = vand.u32 %v787, 4294901760
    %1103 = vmatpush1.msra.mxu0 %v1102
    %1104 = vmatprep.subr.mxu0 0.0
    %v1105 = vand.u32 %v786, 4294901760
    %1106 = vmatpush1.msra.mxu0 %v1105
    %1107 = vmatprep.subr.mxu0 0.0
    %v1108 = vand.u32 %v785, 4294901760
    %1109 = vmatpush1.msra.mxu0 %v1108
    %1110 = vmatprep.subr.mxu0 0.0
    %v1111 = vand.u32 %v784, 4294901760
    %1112 = vmatpush1.msra.mxu0 %v1111
    %1113 = vmatprep.subr.mxu0 0.0
    %1114 = vmatpush2.msra.mxu0 0.0
    %1115 = vmatprep.subr.mxu0 0.0
    %1116 = vmatpush2.msra.mxu0 0.0
    %1117 = vmatprep.subr.mxu0 0.0
    %1118 = vmatpush2.msra.mxu0 0.0
    %1119 = vmatprep.subr.mxu0 0.0
    %1120 = vmatpush2.msra.mxu0 0.0
    %1121 = vmatprep.subr.mxu0 0.0
    %1122 = vmatpush2.msra.mxu0 0.0
    %1123 = vmatprep.subr.mxu0 0.0
    %1124 = vmatpush2.msra.mxu0 0.0
    %1125 = vmatprep.subr.mxu0 0.0
    %1126 = vmatpush2.msra.mxu0 0.0
    %1127 = vmatprep.subr.mxu0 0.0
    %1128 = vmatpush2.msra.mxu0 0.0
    %1129 = vmatprep.subr.mxu0 0.0
    %1130 = vmatpush2.msra.mxu0 0.0
    %1131 = vmatprep.subr.mxu0 0.0
    %1132 = vmatpush2.msra.mxu0 0.0
    %1133 = vmatprep.subr.mxu0 0.0
    %1134 = vmatpush2.msra.mxu0 0.0
    %1135 = vmatprep.subr.mxu0 0.0
    %1136 = vmatpush2.msra.mxu0 0.0
    %1137 = vmatprep.subr.mxu0 0.0
    %1138 = vmatpush2.msra.mxu0 0.0
    %1139 = vmatprep.subr.mxu0 0.0
    %1140 = vmatpush2.msra.mxu0 0.0
    %1141 = vmatprep.subr.mxu0 0.0
    %1142 = vmatpush2.msra.mxu0 0.0
    %1143 = vmatprep.subr.mxu0 0.0
    %1144 = vmatpush2.msra.mxu0 0.0
    %1145 = vmatprep.mubr.f32.mxu0 0.0
    %v1146 = vand.u32 %v799, 4294901760
    %v1147 = vsub.f32 %v799, %v1146
    %v1148 = vand.u32 %v1147, 4294901760
    %1149 = vmatmul.mubr.f32.gmra.mxu0 %v1148
    %v1150 = vpop.f32.mrf.mxu0
    %v1151 = vadd.f32 %v1067, %v1150
    %v1152 = vpop.f32.mrf.mxu0
    %1153 = vmatprep.mubr.f32.mxu0 0.0
    %v1154 = vand.u32 %v802, 4294901760
    %v1155 = vsub.f32 %v802, %v1154
    %v1156 = vand.u32 %v1155, 4294901760
    %1157 = vmatmul.mubr.f32.gmra.mxu0 %v1156
    %v1158 = vpop.f32.mrf.mxu0
    %v1159 = vadd.f32 %v1074, %v1158
    %v1160 = vpop.f32.mrf.mxu0
    %1161 = vdwg.mxu0
    %1162 = vmatprep.subr.mxu0 0.0
    %1163 = vmatpush1.msra.mxu0 0.0
    %1164 = vmatprep.subr.mxu0 0.0
    %1165 = vmatpush1.msra.mxu0 0.0
    %1166 = vmatprep.subr.mxu0 0.0
    %1167 = vmatpush1.msra.mxu0 0.0
    %1168 = vmatprep.subr.mxu0 0.0
    %1169 = vmatpush1.msra.mxu0 0.0
    %1170 = vmatprep.subr.mxu0 0.0
    %1171 = vmatpush1.msra.mxu0 0.0
    %1172 = vmatprep.subr.mxu0 0.0
    %1173 = vmatpush1.msra.mxu0 0.0
    %1174 = vmatprep.subr.mxu0 0.0
    %1175 = vmatpush1.msra.mxu0 0.0
    %1176 = vmatprep.subr.mxu0 0.0
    %1177 = vmatpush1.msra.mxu0 0.0
    %1178 = vmatprep.subr.mxu0 0.0
    %1179 = vmatpush1.msra.mxu0 0.0
    %1180 = vmatprep.subr.mxu0 0.0
    %1181 = vmatpush1.msra.mxu0 0.0
    %1182 = vmatprep.subr.mxu0 0.0
    %1183 = vmatpush1.msra.mxu0 0.0
    %1184 = vmatprep.subr.mxu0 0.0
    %1185 = vmatpush1.msra.mxu0 0.0
    %1186 = vmatprep.subr.mxu0 0.0
    %v1187 = vand.u32 %v787, 4294901760
    %v1188 = vsub.f32 %v787, %v1187
    %v1189 = vand.u32 %v1188, 4294901760
    %1190 = vmatpush1.msra.mxu0 %v1189
    %1191 = vmatprep.subr.mxu0 0.0
    %v1192 = vand.u32 %v786, 4294901760
    %v1193 = vsub.f32 %v786, %v1192
    %v1194 = vand.u32 %v1193, 4294901760
    %1195 = vmatpush1.msra.mxu0 %v1194
    %1196 = vmatprep.subr.mxu0 0.0
    %v1197 = vand.u32 %v785, 4294901760
    %v1198 = vsub.f32 %v785, %v1197
    %v1199 = vand.u32 %v1198, 4294901760
    %1200 = vmatpush1.msra.mxu0 %v1199
    %1201 = vmatprep.subr.mxu0 0.0
    %v1202 = vand.u32 %v784, 4294901760
    %v1203 = vsub.f32 %v784, %v1202
    %v1204 = vand.u32 %v1203, 4294901760
    %1205 = vmatpush1.msra.mxu0 %v1204
    %1206 = vmatprep.subr.mxu0 0.0
    %1207 = vmatpush2.msra.mxu0 0.0
    %1208 = vmatprep.subr.mxu0 0.0
    %1209 = vmatpush2.msra.mxu0 0.0
    %1210 = vmatprep.subr.mxu0 0.0
    %1211 = vmatpush2.msra.mxu0 0.0
    %1212 = vmatprep.subr.mxu0 0.0
    %1213 = vmatpush2.msra.mxu0 0.0
    %1214 = vmatprep.subr.mxu0 0.0
    %1215 = vmatpush2.msra.mxu0 0.0
    %1216 = vmatprep.subr.mxu0 0.0
    %1217 = vmatpush2.msra.mxu0 0.0
    %1218 = vmatprep.subr.mxu0 0.0
    %1219 = vmatpush2.msra.mxu0 0.0
    %1220 = vmatprep.subr.mxu0 0.0
    %1221 = vmatpush2.msra.mxu0 0.0
    %1222 = vmatprep.subr.mxu0 0.0
    %1223 = vmatpush2.msra.mxu0 0.0
    %1224 = vmatprep.subr.mxu0 0.0
    %1225 = vmatpush2.msra.mxu0 0.0
    %1226 = vmatprep.subr.mxu0 0.0
    %1227 = vmatpush2.msra.mxu0 0.0
    %1228 = vmatprep.subr.mxu0 0.0
    %1229 = vmatpush2.msra.mxu0 0.0
    %1230 = vmatprep.subr.mxu0 0.0
    %1231 = vmatpush2.msra.mxu0 0.0
    %1232 = vmatprep.subr.mxu0 0.0
    %1233 = vmatpush2.msra.mxu0 0.0
    %1234 = vmatprep.subr.mxu0 0.0
    %1235 = vmatpush2.msra.mxu0 0.0
    %1236 = vmatprep.subr.mxu0 0.0
    %1237 = vmatpush2.msra.mxu0 0.0
    %1238 = vmatprep.mubr.f32.mxu0 0.0
    %v1239 = vand.u32 %v799, 4294901760
    %1240 = vmatmul.mubr.f32.gmra.mxu0 %v1239
    %v1241 = vpop.f32.mrf.mxu0
    %v1242 = vadd.f32 %v1151, %v1241
    %v1243 = vpop.f32.mrf.mxu0
    %1244 = vmatprep.mubr.f32.mxu0 0.0
    %v1245 = vand.u32 %v802, 4294901760
    %1246 = vmatmul.mubr.f32.gmra.mxu0 %v1245
    %v1247 = vpop.f32.mrf.mxu0
    %v1248 = vadd.f32 %v1159, %v1247
    %v1249 = vpop.f32.mrf.mxu0
    %1250 = vdwg.mxu0
    %1251 = vmatprep.subr.mxu0 0.0
    %1252 = vmatpush1.msra.mxu0 0.0
    %1253 = vmatprep.subr.mxu0 0.0
    %1254 = vmatpush1.msra.mxu0 0.0
    %1255 = vmatprep.subr.mxu0 0.0
    %1256 = vmatpush1.msra.mxu0 0.0
    %1257 = vmatprep.subr.mxu0 0.0
    %1258 = vmatpush1.msra.mxu0 0.0
    %1259 = vmatprep.subr.mxu0 0.0
    %1260 = vmatpush1.msra.mxu0 0.0
    %1261 = vmatprep.subr.mxu0 0.0
    %1262 = vmatpush1.msra.mxu0 0.0
    %1263 = vmatprep.subr.mxu0 0.0
    %1264 = vmatpush1.msra.mxu0 0.0
    %1265 = vmatprep.subr.mxu0 0.0
    %1266 = vmatpush1.msra.mxu0 0.0
    %1267 = vmatprep.subr.mxu0 0.0
    %1268 = vmatpush1.msra.mxu0 0.0
    %1269 = vmatprep.subr.mxu0 0.0
    %1270 = vmatpush1.msra.mxu0 0.0
    %1271 = vmatprep.subr.mxu0 0.0
    %1272 = vmatpush1.msra.mxu0 0.0
    %1273 = vmatprep.subr.mxu0 0.0
    %1274 = vmatpush1.msra.mxu0 0.0
    %1275 = vmatprep.subr.mxu0 0.0
    %v1276 = vand.u32 %v787, 4294901760
    %1277 = vmatpush1.msra.mxu0 %v1276
    %1278 = vmatprep.subr.mxu0 0.0
    %v1279 = vand.u32 %v786, 4294901760
    %1280 = vmatpush1.msra.mxu0 %v1279
    %1281 = vmatprep.subr.mxu0 0.0
    %v1282 = vand.u32 %v785, 4294901760
    %1283 = vmatpush1.msra.mxu0 %v1282
    %1284 = vmatprep.subr.mxu0 0.0
    %v1285 = vand.u32 %v784, 4294901760
    %1286 = vmatpush1.msra.mxu0 %v1285
    %1287 = vmatprep.subr.mxu0 0.0
    %1288 = vmatpush2.msra.mxu0 0.0
    %1289 = vmatprep.subr.mxu0 0.0
    %1290 = vmatpush2.msra.mxu0 0.0
    %1291 = vmatprep.subr.mxu0 0.0
    %1292 = vmatpush2.msra.mxu0 0.0
    %1293 = vmatprep.subr.mxu0 0.0
    %1294 = vmatpush2.msra.mxu0 0.0
    %1295 = vmatprep.subr.mxu0 0.0
    %1296 = vmatpush2.msra.mxu0 0.0
    %1297 = vmatprep.subr.mxu0 0.0
    %1298 = vmatpush2.msra.mxu0 0.0
    %1299 = vmatprep.subr.mxu0 0.0
    %1300 = vmatpush2.msra.mxu0 0.0
    %1301 = vmatprep.subr.mxu0 0.0
    %1302 = vmatpush2.msra.mxu0 0.0
    %1303 = vmatprep.subr.mxu0 0.0
    %1304 = vmatpush2.msra.mxu0 0.0
    %1305 = vmatprep.subr.mxu0 0.0
    %1306 = vmatpush2.msra.mxu0 0.0
    %1307 = vmatprep.subr.mxu0 0.0
    %1308 = vmatpush2.msra.mxu0 0.0
    %1309 = vmatprep.subr.mxu0 0.0
    %1310 = vmatpush2.msra.mxu0 0.0
    %1311 = vmatprep.subr.mxu0 0.0
    %1312 = vmatpush2.msra.mxu0 0.0
    %1313 = vmatprep.subr.mxu0 0.0
    %1314 = vmatpush2.msra.mxu0 0.0
    %1315 = vmatprep.subr.mxu0 0.0
    %1316 = vmatpush2.msra.mxu0 0.0
    %1317 = vmatprep.subr.mxu0 0.0
    %1318 = vmatpush2.msra.mxu0 0.0
    %1319 = vmatprep.mubr.f32.mxu0 0.0
    %v1320 = vand.u32 %v799, 4294901760
    %1321 = vmatmul.mubr.f32.gmra.mxu0 %v1320
    %v1322 = vpop.f32.mrf.mxu0
    %v1323 = vadd.f32 %v1242, %v1322
    %v1324 = vpop.f32.mrf.mxu0
    %1325 = vmatprep.mubr.f32.mxu0 0.0
    %v1326 = vand.u32 %v802, 4294901760
    %1327 = vmatmul.mubr.f32.gmra.mxu0 %v1326
    %v1328 = vpop.f32.mrf.mxu0
    %v1329 = vadd.f32 %v1248, %v1328
    %v1330 = vpop.f32.mrf.mxu0
    %1331 = vdwg.mxu0
    %v1332 = vmax.f32 %v1323, 0.0
    %v1333 = vmax.f32 %v1329, 0.0
    %1335 = vset.pattern.permute.xlu0 0
    %1336 = vperm.xlu0 %1335, %v50
    %v1337 = vpop.permute.xlu0 %1336
    %1340 = vset.pattern.permute.xlu0 0
    %1341 = vperm.xlu0 %1340, %v51
    %v1342 = vpop.permute.xlu0 %1341
    %v1344 = vmul.f32 %v1332, %v1337
    %v1345 = vmul.f32 %v1333, %v1342
    %v1346 = vadd.f32 %v1344, %v1345
    %v1347 = vrot.slane %v1346, 4
    %v1348 = vadd.f32 %v1346, %v1347
    %v1349 = vrot.slane %v1348, 2
    %v1350 = vadd.f32 %v1348, %v1349
    %v1351 = vrot.slane %v1350, 1
    %v1352 = vadd.f32 %v1350, %v1351
    %1353 = vst [vmem:[#allocation2] sm:$0x1] %v1352
    // Predicated region
    $region34: #{tpu_custom_call.1} parent=1 // pred_check
      _
    $region35: #{tpu_custom_call.1} parent=1 // pred_check_branch
      %1355 = sbr.rel (0) target = $region37
    $region36: #{tpu_custom_call.1} parent=1 // pred_region
      %s1357 = ssub.s32 16, 16
      %1358 = vsyncadd [#allocation3], %s1357
      %s1360 = sshll.u32 [#allocation2], 4
      %s1361 = int_to_ptr.vmem [resolvable:$true] %s1360
      %1363 = dma.vmem_to_hbm [thread:$0]  %s1361, 16, %s8, [#allocation3]
    $region37: #{tpu_custom_call.1} parent=1 // pred_fallthru
      _
    // Predicated region
    $region38: #{tpu_custom_call.1} parent=1 // pred_check
      _
    $region39: #{tpu_custom_call.1} parent=1 // pred_check_branch
      %1365 = sbr.rel (0) target = $region41
    $region40: #{tpu_custom_call.1} parent=1 // pred_region
      %1366 = dma.done [#allocation3], 16
    $region41: #{tpu_custom_call.1} parent=1 // pred_fallthru
      _
    %1367 = vsyncpa [#allocation3], 1

</llo_original>
